<compile_context>
chip_gen: v5e
topology: v5e:2x2
jax: 0.10.0
libtpu: 0.0.40
codegen_flags: <defaults>
</compile_context>

<pallas_src>
import functools

import jax
import jax.numpy as jnp
from jax.experimental import pallas as pl
from jax.experimental.pallas import tpu as pltpu


def _cgc_gating_kernel(task_ref, shared_ref, x_ref, w_ref, out_ref, *, n1, n2, D):
    # Gate matmul on the MXU: native-dtype operands, f32 accumulation.
    gate = jnp.dot(x_ref[...], w_ref[...],
                   preferred_element_type=jnp.float32)          # (Bt, E)

    # Numerically-stabilized softmax over the (small) expert axis. Normalizing the
    # (Bt, E) gate is cheaper than normalizing the (Bt, D) mixture afterwards.
    gate = gate - jnp.max(gate, axis=1, keepdims=True)
    p = jnp.exp(gate)                                           # (Bt, E)
    denom = jnp.sum(p, axis=1, keepdims=True)                   # (Bt, 1)
    p = p * pl.reciprocal(denom, approx=True)                   # normalized gate

    # Experts arrive flattened as (Bt, n*D); keep elementwise math in f32
    # (mandatory on v5e; cheap everywhere).
    task = task_ref[...].astype(jnp.float32)                    # (Bt, n1*D)
    shared = shared_ref[...].astype(jnp.float32)                # (Bt, n2*D)

    # Segmented multiply + accumulate over the (small, static) expert axis.
    # No concat, no (B,E,D) broadcast temporary, no E-axis relayout of the gate:
    # each step is a dense (Bt, D) VPU multiply by a per-row scalar column.
    acc = task[:, 0:D] * p[:, 0:1]
    for e in range(1, n1):
        acc += task[:, e * D:(e + 1) * D] * p[:, e:e + 1]
    for e in range(n2):
        acc += shared[:, e * D:(e + 1) * D] * p[:, n1 + e:n1 + e + 1]

    out_ref[...] = acc.astype(out_ref.dtype)


def _pick_batch_tile(B):
    # Largest sublane-aligned tile that divides B (per-row footprint here is tiny,
    # so VMEM is never the limiter even on v7x's 64 MiB; cap at 1024 rows anyway).
    for cand in (1024, 512, 256, 128, 64, 32, 16, 8):
        if B % cand == 0:
            return cand
    return B  # fall back to a single full-array block (e.g. B=2)


def cgc_gating_network(task_expert_input, shared_expert_input, inp, weight_w,
                       *, block_b=None):
    B, n1, D = task_expert_input.shape
    B2, n2, D2 = shared_expert_input.shape
    in_shape, E = weight_w.shape
    assert B2 == B and D2 == D
    assert E == n1 + n2
    assert inp.shape == (B, in_shape)

    # Free row-major reshape: experts packed densely along lanes (no (E,D) tile padding).
    task_flat = task_expert_input.reshape(B, n1 * D)
    shared_flat = shared_expert_input.reshape(B, n2 * D)

    if block_b is None:
        block_b = _pick_batch_tile(B)
    assert B % block_b == 0
    grid = (B // block_b,)

    kernel = functools.partial(_cgc_gating_kernel, n1=n1, n2=n2, D=D)
    out_dtype = task_expert_input.dtype

    return pl.pallas_call(
        kernel,
        out_shape=jax.ShapeDtypeStruct((B, D), out_dtype),
        grid_spec=pltpu.PrefetchScalarGridSpec(
            num_scalar_prefetch=0,
            grid=grid,
            in_specs=[
                pl.BlockSpec((block_b, n1 * D), lambda i: (i, 0)),
                pl.BlockSpec((block_b, n2 * D), lambda i: (i, 0)),
                pl.BlockSpec((block_b, in_shape), lambda i: (i, 0)),
                pl.BlockSpec((in_shape, E), lambda i: (0, 0)),
            ],
            out_specs=pl.BlockSpec((block_b, D), lambda i: (i, 0)),
        ),
        compiler_params=pltpu.CompilerParams(
            dimension_semantics=("parallel",),   # batch axis shards across v7x's 2 TCs
        ),
    )(task_flat, shared_flat, inp, weight_w)


def _reference(task_expert_input, shared_expert_input, inp, weight_w):
    combined = jnp.concatenate([task_expert_input, shared_expert_input], axis=1)
    gate = jnp.einsum("bi,ie->be", inp, weight_w)
    gate_act = jax.nn.softmax(gate, axis=1)
    return jnp.einsum("bed,be->bd", combined, gate_act)


if __name__ == "__main__":
    key = jax.random.PRNGKey(0)
    k1, k2, k3, k4 = jax.random.split(key, 4)

    batch = 16
    n_experts_1 = 3
    n_experts_2 = 2
    total_experts = n_experts_1 + n_experts_2
    dim1 = 32        # expert output dim
    in_shape = 16    # gating input dim

    task_expert_input = jax.random.normal(k1, (batch, n_experts_1, dim1), jnp.float32)
    shared_expert_input = jax.random.normal(k2, (batch, n_experts_2, dim1), jnp.float32)
    inp = jax.random.normal(k3, (batch, in_shape), jnp.float32)

    # xavier_normal_ init for weight_w (in_shape, total_experts)
    xavier_std = (2.0 / (in_shape + total_experts)) ** 0.5
    weight_w = xavier_std * jax.random.normal(k4, (in_shape, total_experts), jnp.float32)

    # Default tiling (single block at this small batch).
    out = cgc_gating_network(task_expert_input, shared_expert_input, inp, weight_w)
    out = jax.block_until_ready(out)

    # Also exercise the multi-block batch grid.
    out_tiled = cgc_gating_network(task_expert_input, shared_expert_input, inp,
                                   weight_w, block_b=8)
    out_tiled = jax.block_until_ready(out_tiled)

    ref = _reference(task_expert_input, shared_expert_input, inp, weight_w)
    assert out.shape == (batch, dim1)
    # Tolerance slightly relaxed for the approx (EUP) reciprocal used in the softmax
    # normalization (~2^-12 relative error); accumulation stays in f32.
    assert jnp.allclose(out, ref, atol=2e-3, rtol=2e-3), "mismatch vs reference"
    assert jnp.allclose(out_tiled, ref, atol=2e-3, rtol=2e-3), "tiled mismatch vs reference"

    print("KERNEL_OK")
</pallas_src>

<mosaic_0001>
module attributes {stable_mosaic.version = 11 : i64} {
  func.func @_cgc_gating_kernel(%arg0: i32, %arg1: memref<16x96xf32, #tpu.memory_space<vmem>>, %arg2: memref<16x64xf32, #tpu.memory_space<vmem>>, %arg3: memref<16x16xf32, #tpu.memory_space<vmem>>, %arg4: memref<16x5xf32, #tpu.memory_space<vmem>>, %arg5: memref<16x32xf32, #tpu.memory_space<vmem>>) attributes {dimension_semantics = [#tpu.dimension_semantics<parallel>], iteration_bounds = array<i64: 1>, scalar_prefetch = 0 : i64, scratch_operands = 0 : i64, tpu.core_type = #tpu.core_type<tc>, window_params = [{transform_indices = @transform_0, window_bounds = array<i64: 16, 96>}, {transform_indices = @transform_1, window_bounds = array<i64: 16, 64>}, {transform_indices = @transform_2, window_bounds = array<i64: 16, 16>}, {pipeline_mode = #tpu.pipeline_mode<synchronous>, transform_indices = @transform_3, window_bounds = array<i64: 16, 5>}, {transform_indices = @transform_4, window_bounds = array<i64: 16, 32>}]} {
    %c0 = arith.constant 0 : index
    %c0_0 = arith.constant 0 : index
    %0 = vector.load %arg3[%c0, %c0_0] : memref<16x16xf32, #tpu.memory_space<vmem>>, vector<16x16xf32>
    %c0_1 = arith.constant 0 : index
    %c0_2 = arith.constant 0 : index
    %1 = vector.load %arg4[%c0_1, %c0_2] : memref<16x5xf32, #tpu.memory_space<vmem>>, vector<16x5xf32>
    %cst = arith.constant dense<0.000000e+00> : vector<16x5xf32>
    %2 = tpu.matmul %0, %1, %cst {dimension_numbers = #tpu.dot_dimension_numbers<[1], [0], [0], [1], [0, 0, 1, 1], [], []>} : vector<16x16xf32>, vector<16x5xf32>, vector<16x5xf32> -> vector<16x5xf32>
    %cst_3 = arith.constant dense<0xFF800000> : vector<16xf32>
    %3 = vector.multi_reduction <maximumf>, %2, %cst_3 [1] : vector<16x5xf32> to vector<16xf32>
    %4 = vector.shape_cast %3 : vector<16xf32> to vector<16x1xf32>
    %5 = vector.broadcast %4 : vector<16x1xf32> to vector<16x5xf32>
    %6 = arith.subf %2, %5 : vector<16x5xf32>
    %7 = math.exp %6 : vector<16x5xf32>
    %cst_4 = arith.constant dense<0.000000e+00> : vector<16xf32>
    %8 = vector.multi_reduction <add>, %7, %cst_4 [1] : vector<16x5xf32> to vector<16xf32>
    %9 = vector.shape_cast %8 : vector<16xf32> to vector<16x1xf32>
    %10 = tpu.reciprocal %9 {approx = true} : vector<16x1xf32> -> vector<16x1xf32>
    %11 = vector.broadcast %10 : vector<16x1xf32> to vector<16x5xf32>
    %12 = arith.mulf %7, %11 : vector<16x5xf32>
    %c0_5 = arith.constant 0 : index
    %c0_6 = arith.constant 0 : index
    %13 = vector.load %arg1[%c0_5, %c0_6] : memref<16x96xf32, #tpu.memory_space<vmem>>, vector<16x96xf32>
    %c0_7 = arith.constant 0 : index
    %c0_8 = arith.constant 0 : index
    %14 = vector.load %arg2[%c0_7, %c0_8] : memref<16x64xf32, #tpu.memory_space<vmem>>, vector<16x64xf32>
    %15 = vector.extract_strided_slice %13 {offsets = [0, 0], sizes = [16, 32], strides = [1, 1]} : vector<16x96xf32> to vector<16x32xf32>
    %16 = vector.extract_strided_slice %12 {offsets = [0, 0], sizes = [16, 1], strides = [1, 1]} : vector<16x5xf32> to vector<16x1xf32>
    %17 = vector.broadcast %16 : vector<16x1xf32> to vector<16x32xf32>
    %18 = arith.mulf %15, %17 : vector<16x32xf32>
    %19 = vector.extract_strided_slice %13 {offsets = [0, 32], sizes = [16, 32], strides = [1, 1]} : vector<16x96xf32> to vector<16x32xf32>
    %20 = vector.extract_strided_slice %12 {offsets = [0, 1], sizes = [16, 1], strides = [1, 1]} : vector<16x5xf32> to vector<16x1xf32>
    %21 = vector.broadcast %20 : vector<16x1xf32> to vector<16x32xf32>
    %22 = arith.mulf %19, %21 : vector<16x32xf32>
    %23 = arith.addf %18, %22 : vector<16x32xf32>
    %24 = vector.extract_strided_slice %13 {offsets = [0, 64], sizes = [16, 32], strides = [1, 1]} : vector<16x96xf32> to vector<16x32xf32>
    %25 = vector.extract_strided_slice %12 {offsets = [0, 2], sizes = [16, 1], strides = [1, 1]} : vector<16x5xf32> to vector<16x1xf32>
    %26 = vector.broadcast %25 : vector<16x1xf32> to vector<16x32xf32>
    %27 = arith.mulf %24, %26 : vector<16x32xf32>
    %28 = arith.addf %23, %27 : vector<16x32xf32>
    %29 = vector.extract_strided_slice %14 {offsets = [0, 0], sizes = [16, 32], strides = [1, 1]} : vector<16x64xf32> to vector<16x32xf32>
    %30 = vector.extract_strided_slice %12 {offsets = [0, 3], sizes = [16, 1], strides = [1, 1]} : vector<16x5xf32> to vector<16x1xf32>
    %31 = vector.broadcast %30 : vector<16x1xf32> to vector<16x32xf32>
    %32 = arith.mulf %29, %31 : vector<16x32xf32>
    %33 = arith.addf %28, %32 : vector<16x32xf32>
    %34 = vector.extract_strided_slice %14 {offsets = [0, 32], sizes = [16, 32], strides = [1, 1]} : vector<16x64xf32> to vector<16x32xf32>
    %35 = vector.extract_strided_slice %12 {offsets = [0, 4], sizes = [16, 1], strides = [1, 1]} : vector<16x5xf32> to vector<16x1xf32>
    %36 = vector.broadcast %35 : vector<16x1xf32> to vector<16x32xf32>
    %37 = arith.mulf %34, %36 : vector<16x32xf32>
    %38 = arith.addf %33, %37 : vector<16x32xf32>
    %c0_9 = arith.constant 0 : index
    %c0_10 = arith.constant 0 : index
    %39 = vector.load %arg5[%c0_9, %c0_10] : memref<16x32xf32, #tpu.memory_space<vmem>>, vector<16x32xf32>
    tpu.vector_store %arg5[%c0_9, %c0_10], %38 {strides = array<i32>} : memref<16x32xf32, #tpu.memory_space<vmem>>, vector<16x32xf32>,
    return
  }
  func.func @transform_0(%arg0: i32) -> (i32, i32) {
    %c0_i32 = arith.constant 0 : i32
    %c0_i32_0 = arith.constant 0 : i32
    return %arg0, %c0_i32 : i32, i32
  }
  func.func @transform_1(%arg0: i32) -> (i32, i32) {
    %c0_i32 = arith.constant 0 : i32
    %c0_i32_0 = arith.constant 0 : i32
    return %arg0, %c0_i32 : i32, i32
  }
  func.func @transform_2(%arg0: i32) -> (i32, i32) {
    %c0_i32 = arith.constant 0 : i32
    %c0_i32_0 = arith.constant 0 : i32
    return %arg0, %c0_i32 : i32, i32
  }
  func.func @transform_3(%arg0: i32) -> (i32, i32) {
    %c0_i32 = arith.constant 0 : i32
    %c0_i32_0 = arith.constant 0 : i32
    %c0_i32_1 = arith.constant 0 : i32
    return %c0_i32, %c0_i32_0 : i32, i32
  }
  func.func @transform_4(%arg0: i32) -> (i32, i32) {
    %c0_i32 = arith.constant 0 : i32
    %c0_i32_0 = arith.constant 0 : i32
    return %arg0, %c0_i32 : i32, i32
  }
}

</mosaic_0001>

<llo_original>
// kernel: tpu_custom_call.1
$region0: #{tpu_custom_call.1}
  #allocation0 [shape = 'u32[]', space=smem, size = 0x4, offset = 0x4, fixed_abs, tag = 'smem constant byte address 0x4 - core index']
  #allocation1 [shape = 'u32[72,128]{1,0:T(1,128)}', space=vmem, size = 0x9000, scoped, tag = 'internal scratch']
  %s0 = inlined_call_operand.vmem [shape: f32[16,96], index: 0, kind: input, shape index: {}]
  %s1 = inlined_call_operand.hbm [shape: f32[16,64], index: 1, kind: input, shape index: {}]
  %s2 = inlined_call_operand.hbm [shape: f32[16,16], index: 2, kind: input, shape index: {}]
  %s3 = inlined_call_operand.vmem [shape: f32[16,5], index: 3, kind: input, shape index: {}]
  %s4 = inlined_call_operand.hbm [shape: f32[16,32], index: 4, kind: output, shape index: {}]
  %s5 = sld [smem:[#allocation0]]
  $region34: #{tpu_custom_call.1} parent=0
    _
  %s7 = ssub.s32 1, %s5
  %s8 = scalar_select 0, %s7, %s5
  $region1: #{tpu_custom_call.1} parent=0
    #allocation2 [shape = 'u8[8192]{0}', space=vmem, size = 0x2000, scoped, tag = 'input window, operand 1, single buffered']
    #allocation3 [shape = 's32[1]{0}', space=sflag, size = 0x4, scoped, tag = 'scoped memory for tpu_custom_call.1']
    #allocation4 [shape = 's32[1]{0}', space=sflag, size = 0x4, scoped, tag = 'scoped memory for tpu_custom_call.1']
    #allocation5 [shape = 'u8[8192]{0}', space=vmem, size = 0x2000, scoped, tag = 'input window, operand 2, single buffered']
    #allocation6 [shape = 's32[1]{0}', space=sflag, size = 0x4, scoped, tag = 'scoped memory for tpu_custom_call.1']
    #allocation7 [shape = 'u8[8192]{0}', space=vmem, size = 0x2000, scoped, tag = 'output window, operand 0, single buffered']
    %9 = vsyncpa [#allocation3], 0
    %10 = vsyncpa [#allocation6], 0
    %11 = vsyncpa [#allocation4], 0
    // Predicated region
    $region2: #{tpu_custom_call.1} parent=1 // pred_check
      _
    $region3: #{tpu_custom_call.1} parent=1 // pred_check_branch
      %13 = sbr.rel (0) target = $region5
    $region4: #{tpu_custom_call.1} parent=1 // pred_region
      _
    $region5: #{tpu_custom_call.1} parent=1 // pred_fallthru
      _
    // Predicated region
    $region6: #{tpu_custom_call.1} parent=1 // pred_check
      _
    $region7: #{tpu_custom_call.1} parent=1 // pred_check_branch
      %15 = sbr.rel (0) target = $region9
    $region8: #{tpu_custom_call.1} parent=1 // pred_region
      %17 = vsyncadd [#allocation3], 0
      %s18 = sshll.u32 %s1, 4
      %s19 = int_to_ptr.hbm [resolvable:$true] %s18
      %s20 = sshll.u32 [#allocation2], 4
      %s21 = int_to_ptr.vmem [resolvable:$true] %s20
      %26 = dma.hbm_to_vmem [thread:$0]  %s19, 256, %s21, [#allocation3], 128, 128, 8
    $region9: #{tpu_custom_call.1} parent=1 // pred_fallthru
      _
    // Predicated region
    $region10: #{tpu_custom_call.1} parent=1 // pred_check
      _
    $region11: #{tpu_custom_call.1} parent=1 // pred_check_branch
      %28 = sbr.rel (0) target = $region13
    $region12: #{tpu_custom_call.1} parent=1 // pred_region
      %30 = vsyncadd [#allocation6], 0
      %s31 = sshll.u32 %s2, 4
      %s32 = int_to_ptr.hbm [resolvable:$true] %s31
      %s33 = sshll.u32 [#allocation5], 4
      %s34 = int_to_ptr.vmem [resolvable:$true] %s33
      %39 = dma.hbm_to_vmem [thread:$0]  %s32, 256, %s34, [#allocation6], 128, 128, 8
    $region13: #{tpu_custom_call.1} parent=1 // pred_fallthru
      _
    // Predicated region
    $region14: #{tpu_custom_call.1} parent=1 // pred_check
      _
    $region15: #{tpu_custom_call.1} parent=1 // pred_check_branch
      %41 = sbr.rel (0) target = $region17
    $region16: #{tpu_custom_call.1} parent=1 // pred_region
      _
    $region17: #{tpu_custom_call.1} parent=1 // pred_fallthru
      _
    // Predicated region
    $region18: #{tpu_custom_call.1} parent=1 // pred_check
      _
    $region19: #{tpu_custom_call.1} parent=1 // pred_check_branch
      %43 = sbr.rel (0) target = $region21
    $region20: #{tpu_custom_call.1} parent=1 // pred_region
      %45 = dma.done [#allocation3], 256
    $region21: #{tpu_custom_call.1} parent=1 // pred_fallthru
      _
    // Predicated region
    $region22: #{tpu_custom_call.1} parent=1 // pred_check
      _
    $region23: #{tpu_custom_call.1} parent=1 // pred_check_branch
      %47 = sbr.rel (0) target = $region25
    $region24: #{tpu_custom_call.1} parent=1 // pred_region
      %49 = dma.done [#allocation6], 256
    $region25: #{tpu_custom_call.1} parent=1 // pred_fallthru
      _
    %v50 = vld [vmem:[#allocation5] sm:$0xff]
    %v51 = vld [vmem:[#allocation5 + $0x8] sm:$0xff]
    %v52 = vld [vmem:[%s3] sm:$0xff]
    %v53 = vld [vmem:[%s3 + $0x8] sm:$0xff]
    %vm54 = vcmask 130048
    %v56 = vsel %vm54, %v50, 0
    %v59 = vsel %vm54, %v51, 0
    %61 = vmatpush.msra.mxu0 0.0
    %62 = vmatpush.msra.mxu0 0.0
    %63 = vmatpush.msra.mxu0 0.0
    %64 = vmatpush.msra.mxu0 0.0
    %65 = vmatpush.msra.mxu0 0.0
    %66 = vmatpush.msra.mxu0 0.0
    %67 = vmatpush.msra.mxu0 0.0
    %68 = vmatpush.msra.mxu0 0.0
    %69 = vmatpush.msra.mxu0 0.0
    %70 = vmatpush.msra.mxu0 0.0
    %71 = vmatpush.msra.mxu0 0.0
    %72 = vmatpush.msra.mxu0 0.0
    %73 = vmatpush.msra.mxu0 0.0
    %74 = vmatpush.msra.mxu0 0.0
    %75 = vmatpush.msra.mxu0 %v53
    %76 = vmatpush.msra.mxu0 %v52
    %77 = vmatmul.f32.gmra.mxu0 %v56
    %v78 = vpop.f32.mrf.mxu0
    %v79 = vadd.f32 0.0, %v78
    %80 = vmatmul.f32.gmra.mxu0 %v59
    %v81 = vpop.f32.mrf.mxu0
    %v82 = vadd.f32 0.0, %v81
    %83 = vdwg.mxu0
    %vm84 = vcmask 39936
    %v85 = vsel %vm84, %v79, -inf
    %86 = vmax.xlane.f32.xlu0 %v85
    %v87 = vpop.xlane.xlu0 %86
    %v88 = vsel %vm84, %v82, -inf
    %89 = vmax.xlane.f32.xlu0 %v88
    %v90 = vpop.xlane.xlu0 %89
    %v91 = vsub.f32 %v79, %v87
    %v92 = vsub.f32 %v82, %v90
    %v93 = vmul.f32 %v91, 1.442695
    %v94 = vpow.pop %v93
    %v95 = vmul.f32 %v92, 1.442695
    %v96 = vpow.pop %v95
    %v97 = vsel %vm84, %v94, 0.0
    %98 = vadd.xlane.f32.xlu0 %v97
    %v99 = vpop.xlane.xlu0 %98
    %v100 = vsel %vm84, %v96, 0.0
    %101 = vadd.xlane.f32.xlu0 %v100
    %v102 = vpop.xlane.xlu0 %101
    %v103 = vrcp.pop %v99
    %v104 = vrcp.pop %v102
    %v105 = vmul.f32 %v94, %v103
    %v106 = vmul.f32 %v96, %v104
    %v107 = vld [vmem:[%s0] sm:$0xff]
    %v108 = vld [vmem:[%s0 + $0x8] sm:$0xff]
    %v109 = vld [vmem:[#allocation2] sm:$0xff]
    %v110 = vld [vmem:[#allocation2 + $0x8] sm:$0xff]
    %112 = vset.pattern.permute.xlu0 0
    %113 = vperm.xlu0 %112, %v105
    %v114 = vpop.permute.xlu0 %113
    %117 = vset.pattern.permute.xlu0 0
    %118 = vperm.xlu0 %117, %v106
    %v119 = vpop.permute.xlu0 %118
    %v121 = vmul.f32 %v107, %v114
    %v122 = vmul.f32 %v108, %v119
    %123 = vset.pattern.permute.xlu0 1
    %124 = vperm.xlu0 %123, %v105
    %v125 = vpop.permute.xlu0 %124
    %127 = vset.pattern.permute.xlu0 1
    %128 = vperm.xlu0 %127, %v106
    %v129 = vpop.permute.xlu0 %128
    %v131 = vmul.f32 %v107, %v125
    %v132 = vmul.f32 %v108, %v129
    %135 = vrot.lane.b32.xlu0 %v131, 96
    %v136 = vpop.permute.xlu0 %135
    %137 = vrot.lane.b32.xlu0 %v132, 96
    %v138 = vpop.permute.xlu0 %137
    %v141 = vadd.f32 %v121, %v136
    %v142 = vadd.f32 %v122, %v138
    %143 = vset.pattern.permute.xlu0 2
    %144 = vperm.xlu0 %143, %v105
    %v145 = vpop.permute.xlu0 %144
    %147 = vset.pattern.permute.xlu0 2
    %148 = vperm.xlu0 %147, %v106
    %v149 = vpop.permute.xlu0 %148
    %v151 = vmul.f32 %v107, %v145
    %v152 = vmul.f32 %v108, %v149
    %155 = vrot.lane.b32.xlu0 %v151, 64
    %v156 = vpop.permute.xlu0 %155
    %157 = vrot.lane.b32.xlu0 %v152, 64
    %v158 = vpop.permute.xlu0 %157
    %v161 = vadd.f32 %v141, %v156
    %v162 = vadd.f32 %v142, %v158
    %163 = vset.pattern.permute.xlu0 3
    %164 = vperm.xlu0 %163, %v105
    %v165 = vpop.permute.xlu0 %164
    %167 = vset.pattern.permute.xlu0 3
    %168 = vperm.xlu0 %167, %v106
    %v169 = vpop.permute.xlu0 %168
    %v171 = vmul.f32 %v109, %v165
    %v172 = vmul.f32 %v110, %v169
    %v173 = vadd.f32 %v161, %v171
    %v174 = vadd.f32 %v162, %v172
    %175 = vset.pattern.permute.xlu0 4
    %176 = vperm.xlu0 %175, %v105
    %v177 = vpop.permute.xlu0 %176
    %179 = vset.pattern.permute.xlu0 4
    %180 = vperm.xlu0 %179, %v106
    %v181 = vpop.permute.xlu0 %180
    %v183 = vmul.f32 %v109, %v177
    %v184 = vmul.f32 %v110, %v181
    %187 = vrot.lane.b32.xlu0 %v183, 96
    %v188 = vpop.permute.xlu0 %187
    %189 = vrot.lane.b32.xlu0 %v184, 96
    %v190 = vpop.permute.xlu0 %189
    %v193 = vadd.f32 %v173, %v188
    %v194 = vadd.f32 %v174, %v190
    %vm195 = vcmask 261120
    %196 = vst.msk [vmem:[#allocation7] sm:$0xff] %vm195, %v193
    %197 = vst.msk [vmem:[#allocation7 + $0x8] sm:$0xff] %vm195, %v194
    // Predicated region
    $region26: #{tpu_custom_call.1} parent=1 // pred_check
      _
    $region27: #{tpu_custom_call.1} parent=1 // pred_check_branch
      %199 = sbr.rel (0) target = $region29
    $region28: #{tpu_custom_call.1} parent=1 // pred_region
      %201 = vsyncadd [#allocation4], 0
      %s202 = sshll.u32 [#allocation7], 4
      %s203 = int_to_ptr.vmem [resolvable:$true] %s202
      %s204 = sshll.u32 %s4, 4
      %s205 = int_to_ptr.hbm [resolvable:$true] %s204
      %210 = dma.vmem_to_hbm [thread:$0]  %s203, 256, %s205, [#allocation4], 128, 128, 8
    $region29: #{tpu_custom_call.1} parent=1 // pred_fallthru
      _
    // Predicated region
    $region30: #{tpu_custom_call.1} parent=1 // pred_check
      _
    $region31: #{tpu_custom_call.1} parent=1 // pred_check_branch
      %212 = sbr.rel (0) target = $region33
    $region32: #{tpu_custom_call.1} parent=1 // pred_region
      %214 = dma.done [#allocation4], 256
    $region33: #{tpu_custom_call.1} parent=1 // pred_fallthru
      _
    %215 = vsyncpa [#allocation3], 1
    %216 = vsyncpa [#allocation6], 1
    %217 = vsyncpa [#allocation4], 1

</llo_original>
